<compile_context>
chip_gen: v7x
topology: tpu7x:2x2x1
jax: 0.10.0
libtpu: 0.0.40
codegen_flags: <defaults>
</compile_context>

<pallas_src>
import numpy as np
import jax
import jax.numpy as jnp
from jax.experimental import pallas as pl
from jax.experimental.pallas import tpu as pltpu


def _dino_kernel(temps_ref, teacher_ref, center_ref, student_ref,
                 loss_ref, tsum_ref, q_scr):
    """Fused DINO loss kernel for one (row-tile r, student crop v) grid step."""
    v = pl.program_id(1)
    inv_tt = temps_ref[0]          # 1 / teacher_temp (SMEM scalar)
    inv_st = temps_ref[1]          # 1 / student_temp (SMEM scalar)

    @pl.when(v == 0)
    def _():
        t_raw = teacher_ref[...].astype(jnp.float32)                 # (2, TB, D)
        # Raw (pre-centering) column sums for the center EMA update.
        tsum_ref[...] = jnp.sum(t_raw, axis=1, keepdims=True).sum(
            axis=0, keepdims=True)                                   # (1, 1, D)
        c = center_ref[...].astype(jnp.float32)                      # (1, D)
        t = (t_raw - c[None, :, :]) * inv_tt
        t = t - jnp.max(t, axis=-1, keepdims=True)
        et = jnp.exp(t)
        # q computed exactly once per row tile, cached across all crops.
        q_scr[...] = et * pl.reciprocal(
            jnp.sum(et, axis=-1, keepdims=True), approx=False)
        loss_ref[...] = jnp.zeros_like(loss_ref)

    # Student log-softmax statistics (computed once per crop tile).
    s = student_ref[...].astype(jnp.float32) * inv_st                 # (TB, D)
    s = s - jnp.max(s, axis=-1, keepdims=True)
    logz = jnp.log(jnp.sum(jnp.exp(s), axis=-1, keepdims=True))       # (TB, 1)

    # Cross-entropy against both cached teacher chunks; chunk iq == v skipped.
    # Uses -sum(q*(s-logz)) == sum(q)*logz - sum(q*s)  (softmax rows sum to 1),
    # so the skip weights only touch (TB, 1)-sized values.
    d0 = jnp.sum(q_scr[0] * s, axis=-1, keepdims=True)                # (TB, 1)
    d1 = jnp.sum(q_scr[1] * s, axis=-1, keepdims=True)                # (TB, 1)
    w0 = (v != 0).astype(jnp.float32)
    w1 = (v != 1).astype(jnp.float32)
    contrib = (w0 + w1) * logz - (w0 * d0 + w1 * d1)                  # (TB, 1)
    loss_ref[...] += jnp.broadcast_to(contrib[None, :, :], loss_ref.shape)


def _vmem_config():
    """Generation-aware (tile budget, vmem limit) derived from physical VMEM."""
    try:
        cap = int(pltpu.get_tpu_info().vmem_capacity_bytes)
    except Exception:
        cap = 64 * 1024 * 1024        # conservative default (v7x per-core VMEM)
    vmem_limit = max(32 << 20, min(cap - (16 << 20), int(cap * 0.80)))
    tile_budget = max(8 << 20, int(cap * 0.40))
    return tile_budget, vmem_limit


def _pick_row_tile(B, D, budget_bytes):
    """Largest row tile TB (multiple of 8, divides B) whose fused working set
    fits the budget.  Per TB row (f32 bytes):
      teacher in (2,TB,D) double-buffered   -> 4 * D * 4
      student in (TB,D) double-buffered     -> 2 * D * 4
      persistent q scratch (2,TB,D)         -> 2 * D * 4
      f32 softmax/CE temporaries            -> ~6 * D * 4
    """
    per_row_bytes = 14 * D * 4
    best, tb = 8, 8
    while tb <= B:
        if B % tb == 0 and tb * per_row_bytes <= budget_bytes:
            best = tb
        tb += 8
    # Prefer >= 2 row tiles so the 'parallel' axis can feed both v7x cores.
    if best == B and B >= 16 and (B // 2) % 8 == 0:
        best = B // 2
    return best


@jax.jit
def _dino_forward(student_output, teacher_output, center, temps, momentum):
    total_s, D = student_output.shape
    total_t, d_t = teacher_output.shape
    assert d_t == D
    assert total_t % 2 == 0, "teacher must hold exactly 2 global crops"
    B = total_t // 2
    assert total_s % B == 0
    ncrops = total_s // B
    assert ncrops >= 2, "need at least 2 crops (n_loss_terms > 0)"
    assert B % 8 == 0, "per-crop batch must be a multiple of 8 (f32 sublanes)"
    assert D % 128 == 0, "out_dim must be a multiple of 128 (lanes)"
    n_loss_terms = 2 * (ncrops - 1)
    # TODO(synk): dist.all_reduce / get_world_size have no single-chip
    # equivalent here; world_size is fixed to 1.
    world_size = 1

    tile_budget, vmem_limit = _vmem_config()
    TB = _pick_row_tile(B, D, tile_budget)
    n_rt = B // TB

    teacher3 = teacher_output.reshape(2, B, D)

    parts, tsum = pl.pallas_call(
        _dino_kernel,
        out_shape=(
            jax.ShapeDtypeStruct((n_rt, TB, 128), jnp.float32),   # per-row CE sums
            jax.ShapeDtypeStruct((n_rt, 1, D), jnp.float32),      # teacher col sums
        ),
        grid_spec=pltpu.PrefetchScalarGridSpec(
            num_scalar_prefetch=0,
            grid=(n_rt, ncrops),    # crops innermost: teacher/q stay resident
            in_specs=[
                pl.BlockSpec(memory_space=pltpu.MemorySpace.SMEM),       # temps
                pl.BlockSpec((2, TB, D), lambda r, v: (0, r, 0)),        # teacher
                pl.BlockSpec((1, D), lambda r, v: (0, 0)),               # center
                pl.BlockSpec((TB, D), lambda r, v: (v * n_rt + r, 0)),   # student
            ],
            out_specs=(
                pl.BlockSpec((1, TB, 128), lambda r, v: (r, 0, 0)),
                pl.BlockSpec((1, 1, D), lambda r, v: (r, 0, 0)),
            ),
            scratch_shapes=[pltpu.VMEM((2, TB, D), jnp.float32)],        # cached q
        ),
        compiler_params=pltpu.CompilerParams(
            dimension_semantics=("parallel", "arbitrary"),
            vmem_limit_bytes=vmem_limit),
    )(temps, teacher3, center, student_output)

    total_loss = jnp.sum(parts[:, :, 0]) / jnp.float32(B * n_loss_terms)
    batch_center = (jnp.sum(tsum[:, 0, :], axis=0, keepdims=True)
                    / jnp.float32(total_t * world_size))
    new_center = center * momentum + batch_center * (1.0 - momentum)
    return total_loss, new_center


class DINOLossPallas:
    """JAX/Pallas re-implementation of DINOLoss.forward (+ center EMA update)."""

    def __init__(self, out_dim, ncrops, warmup_teacher_temp, teacher_temp,
                 warmup_teacher_temp_epochs, nepochs,
                 student_temp=0.1, center_momentum=0.9):
        self.out_dim = out_dim
        self.ncrops = ncrops
        self.student_temp = float(student_temp)
        self.center_momentum = jnp.float32(center_momentum)
        self.center = jnp.zeros((1, out_dim), jnp.float32)
        self.teacher_temp_schedule = np.concatenate((
            np.linspace(warmup_teacher_temp, teacher_temp,
                        warmup_teacher_temp_epochs),
            np.ones(nepochs - warmup_teacher_temp_epochs) * teacher_temp,
        ))

    def __call__(self, student_output, teacher_output, epoch):
        assert student_output.shape[1] == self.out_dim
        assert student_output.shape[0] == self.ncrops * (teacher_output.shape[0] // 2)
        temp = float(self.teacher_temp_schedule[epoch])
        # Temperatures passed as data (SMEM scalars): no recompile per epoch.
        temps = jnp.array([1.0 / temp, 1.0 / self.student_temp], jnp.float32)
        loss, new_center = _dino_forward(student_output, teacher_output,
                                         self.center, temps,
                                         self.center_momentum)
        # New center is returned from the pure jitted function (not mutated
        # inside jit), then stored on the module eagerly.
        self.center = new_center
        return loss


def _reference(student_output, teacher_output, center, temp, student_temp,
               ncrops, center_momentum):
    s = student_output / student_temp
    student_chunks = jnp.split(s, ncrops, axis=0)
    q_all = jax.nn.softmax((teacher_output - center) / temp, axis=-1)
    teacher_chunks = jnp.split(q_all, 2, axis=0)
    total, n = 0.0, 0
    for iq, q in enumerate(teacher_chunks):
        for v in range(ncrops):
            if v == iq:
                continue
            loss = jnp.sum(-q * jax.nn.log_softmax(student_chunks[v], axis=-1),
                           axis=-1)
            total += loss.mean()
            n += 1
    total = total / n
    batch_center = (jnp.sum(teacher_output, axis=0, keepdims=True)
                    / teacher_output.shape[0])
    new_center = center * center_momentum + batch_center * (1 - center_momentum)
    return total, new_center


if __name__ == "__main__":
    out_dim = 128
    ncrops = 4
    B = 8           # samples per crop
    epoch = 3

    loss_mod = DINOLossPallas(
        out_dim=out_dim, ncrops=ncrops,
        warmup_teacher_temp=0.04, teacher_temp=0.07,
        warmup_teacher_temp_epochs=5, nepochs=20,
        student_temp=0.1, center_momentum=0.9,
    )

    key = jax.random.PRNGKey(0)
    k1, k2 = jax.random.split(key)
    student_output = jax.random.normal(k1, (ncrops * B, out_dim), jnp.float32)
    teacher_output = jax.random.normal(k2, (2 * B, out_dim), jnp.float32)

    center0 = loss_mod.center
    loss = loss_mod(student_output, teacher_output, epoch)
    loss = jax.block_until_ready(loss)
    new_center = jax.block_until_ready(loss_mod.center)

    # correctness check against a pure-JAX reference
    temp = float(loss_mod.teacher_temp_schedule[epoch])
    ref_loss, ref_center = _reference(student_output, teacher_output, center0,
                                      temp, loss_mod.student_temp, ncrops,
                                      float(loss_mod.center_momentum))
    assert np.allclose(np.asarray(loss), np.asarray(ref_loss),
                       rtol=1e-4, atol=1e-5), (loss, ref_loss)
    assert np.allclose(np.asarray(new_center), np.asarray(ref_center),
                       rtol=1e-4, atol=1e-5)

    print("KERNEL_OK")
</pallas_src>

<mosaic_0001>
module attributes {stable_mosaic.version = 11 : i64} {
  func.func @_dino_kernel(%arg0: i32, %arg1: i32, %arg2: memref<2xf32, #tpu.memory_space<smem>>, %arg3: memref<2x8x128xf32, #tpu.memory_space<vmem>>, %arg4: memref<1x128xf32, #tpu.memory_space<vmem>>, %arg5: memref<8x128xf32, #tpu.memory_space<vmem>>, %arg6: memref<1x8x128xf32, #tpu.memory_space<vmem>>, %arg7: memref<1x1x128xf32, #tpu.memory_space<vmem>>, %arg8: memref<2x8x128xf32, #tpu.memory_space<vmem>>) attributes {dimension_semantics = [#tpu.dimension_semantics<parallel>, #tpu.dimension_semantics<arbitrary>], iteration_bounds = array<i64: 1, 4>, scalar_prefetch = 0 : i64, scratch_operands = 1 : i64, tpu.core_type = #tpu.core_type<tc>, window_params = [{transform_indices = @transform_0, window_bounds = array<i64: 2>}, {transform_indices = @transform_1, window_bounds = array<i64: 2, 8, 128>}, {pipeline_mode = #tpu.pipeline_mode<synchronous>, transform_indices = @transform_2, window_bounds = array<i64: 1, 128>}, {transform_indices = @transform_3, window_bounds = array<i64: 8, 128>}, {transform_indices = @transform_4, window_bounds = array<i64: 1, 8, 128>}, {transform_indices = @transform_5, window_bounds = array<i64: 1, 1, 128>}]} {
    %c0 = arith.constant 0 : index
    %0 = memref.load %arg2[%c0] : memref<2xf32, #tpu.memory_space<smem>>
    %c1 = arith.constant 1 : index
    %1 = memref.load %arg2[%c1] : memref<2xf32, #tpu.memory_space<smem>>
    %c0_i32 = arith.constant 0 : i32
    %2 = arith.cmpi eq, %arg1, %c0_i32 : i32
    %3 = arith.extui %2 : i1 to i32
    %c0_i32_0 = arith.constant 0 : i32
    %4 = arith.cmpi ne, %3, %c0_i32_0 : i32
    scf.if %4 {
      %c0_19 = arith.constant 0 : index
      %c0_20 = arith.constant 0 : index
      %c0_21 = arith.constant 0 : index
      %47 = vector.load %arg3[%c0_19, %c0_20, %c0_21] : memref<2x8x128xf32, #tpu.memory_space<vmem>>, vector<2x8x128xf32>
      %cst_22 = arith.constant dense<0.000000e+00> : vector<2x128xf32>
      %48 = vector.multi_reduction <add>, %47, %cst_22 [1] : vector<2x8x128xf32> to vector<2x128xf32>
      %49 = vector.shape_cast %48 : vector<2x128xf32> to vector<2x1x128xf32>
      %cst_23 = arith.constant dense<0.000000e+00> : vector<1x128xf32>
      %50 = vector.multi_reduction <add>, %49, %cst_23 [0] : vector<2x1x128xf32> to vector<1x128xf32>
      %51 = vector.shape_cast %50 : vector<1x128xf32> to vector<1x1x128xf32>
      %c0_24 = arith.constant 0 : index
      %c0_25 = arith.constant 0 : index
      %c0_26 = arith.constant 0 : index
      %52 = vector.load %arg7[%c0_24, %c0_25, %c0_26] : memref<1x1x128xf32, #tpu.memory_space<vmem>>, vector<1x1x128xf32>
      tpu.vector_store %arg7[%c0_24, %c0_25, %c0_26], %51 {strides = array<i32>} : memref<1x1x128xf32, #tpu.memory_space<vmem>>, vector<1x1x128xf32>,
      %c0_27 = arith.constant 0 : index
      %c0_28 = arith.constant 0 : index
      %53 = vector.load %arg4[%c0_27, %c0_28] : memref<1x128xf32, #tpu.memory_space<vmem>>, vector<1x128xf32>
      %54 = vector.shape_cast %53 : vector<1x128xf32> to vector<1x1x128xf32>
      %55 = vector.broadcast %54 : vector<1x1x128xf32> to vector<2x8x128xf32>
      %56 = arith.subf %47, %55 : vector<2x8x128xf32>
      %57 = vector.broadcast %0 : f32 to vector<2x8x128xf32>
      %58 = arith.mulf %56, %57 : vector<2x8x128xf32>
      %cst_29 = arith.constant dense<0xFF800000> : vector<2x8xf32>
      %59 = vector.multi_reduction <maximumf>, %58, %cst_29 [2] : vector<2x8x128xf32> to vector<2x8xf32>
      %60 = vector.shape_cast %59 : vector<2x8xf32> to vector<2x8x1xf32>
      %61 = vector.broadcast %60 : vector<2x8x1xf32> to vector<2x8x128xf32>
      %62 = arith.subf %58, %61 : vector<2x8x128xf32>
      %63 = math.exp %62 : vector<2x8x128xf32>
      %cst_30 = arith.constant dense<0.000000e+00> : vector<2x8xf32>
      %64 = vector.multi_reduction <add>, %63, %cst_30 [2] : vector<2x8x128xf32> to vector<2x8xf32>
      %65 = vector.shape_cast %64 : vector<2x8xf32> to vector<2x8x1xf32>
      %66 = tpu.reciprocal %65 : vector<2x8x1xf32> -> vector<2x8x1xf32>
      %67 = vector.broadcast %66 : vector<2x8x1xf32> to vector<2x8x128xf32>
      %68 = arith.mulf %63, %67 : vector<2x8x128xf32>
      %c0_31 = arith.constant 0 : index
      %c0_32 = arith.constant 0 : index
      %c0_33 = arith.constant 0 : index
      %69 = vector.load %arg8[%c0_31, %c0_32, %c0_33] : memref<2x8x128xf32, #tpu.memory_space<vmem>>, vector<2x8x128xf32>
      tpu.vector_store %arg8[%c0_31, %c0_32, %c0_33], %68 {strides = array<i32>} : memref<2x8x128xf32, #tpu.memory_space<vmem>>, vector<2x8x128xf32>,
      %cst_34 = arith.constant 0.000000e+00 : f32
      %70 = vector.broadcast %cst_34 : f32 to vector<1x8x128xf32>
      %c0_35 = arith.constant 0 : index
      %c0_36 = arith.constant 0 : index
      %c0_37 = arith.constant 0 : index
      %71 = vector.load %arg6[%c0_35, %c0_36, %c0_37] : memref<1x8x128xf32, #tpu.memory_space<vmem>>, vector<1x8x128xf32>
      tpu.vector_store %arg6[%c0_35, %c0_36, %c0_37], %70 {strides = array<i32>} : memref<1x8x128xf32, #tpu.memory_space<vmem>>, vector<1x8x128xf32>,
    } else {
    }
    %c0_1 = arith.constant 0 : index
    %c0_2 = arith.constant 0 : index
    %5 = vector.load %arg5[%c0_1, %c0_2] : memref<8x128xf32, #tpu.memory_space<vmem>>, vector<8x128xf32>
    %6 = vector.broadcast %1 : f32 to vector<8x128xf32>
    %7 = arith.mulf %5, %6 : vector<8x128xf32>
    %cst = arith.constant dense<0xFF800000> : vector<8xf32>
    %8 = vector.multi_reduction <maximumf>, %7, %cst [1] : vector<8x128xf32> to vector<8xf32>
    %9 = vector.shape_cast %8 : vector<8xf32> to vector<8x1xf32>
    %10 = vector.broadcast %9 : vector<8x1xf32> to vector<8x128xf32>
    %11 = arith.subf %7, %10 : vector<8x128xf32>
    %12 = math.exp %11 : vector<8x128xf32>
    %cst_3 = arith.constant dense<0.000000e+00> : vector<8xf32>
    %13 = vector.multi_reduction <add>, %12, %cst_3 [1] : vector<8x128xf32> to vector<8xf32>
    %14 = vector.shape_cast %13 : vector<8xf32> to vector<8x1xf32>
    %15 = math.log %14 : vector<8x1xf32>
    %c0_4 = arith.constant 0 : index
    %c0_5 = arith.constant 0 : index
    %c0_6 = arith.constant 0 : index
    %16 = vector.load %arg8[%c0_4, %c0_5, %c0_6] : memref<2x8x128xf32, #tpu.memory_space<vmem>>, vector<1x8x128xf32>
    %17 = vector.shape_cast %16 : vector<1x8x128xf32> to vector<8x128xf32>
    %18 = arith.mulf %17, %11 : vector<8x128xf32>
    %cst_7 = arith.constant dense<0.000000e+00> : vector<8xf32>
    %19 = vector.multi_reduction <add>, %18, %cst_7 [1] : vector<8x128xf32> to vector<8xf32>
    %20 = vector.shape_cast %19 : vector<8xf32> to vector<8x1xf32>
    %c1_8 = arith.constant 1 : index
    %c0_9 = arith.constant 0 : index
    %c0_10 = arith.constant 0 : index
    %21 = vector.load %arg8[%c1_8, %c0_9, %c0_10] : memref<2x8x128xf32, #tpu.memory_space<vmem>>, vector<1x8x128xf32>
    %22 = vector.shape_cast %21 : vector<1x8x128xf32> to vector<8x128xf32>
    %23 = arith.mulf %22, %11 : vector<8x128xf32>
    %cst_11 = arith.constant dense<0.000000e+00> : vector<8xf32>
    %24 = vector.multi_reduction <add>, %23, %cst_11 [1] : vector<8x128xf32> to vector<8xf32>
    %25 = vector.shape_cast %24 : vector<8xf32> to vector<8x1xf32>
    %c0_i32_12 = arith.constant 0 : i32
    %26 = arith.cmpi ne, %arg1, %c0_i32_12 : i32
    %27 = arith.extui %26 : i1 to i32
    %28 = arith.sitofp %27 : i32 to f32
    %c1_i32 = arith.constant 1 : i32
    %29 = arith.cmpi ne, %arg1, %c1_i32 : i32
    %30 = arith.extui %29 : i1 to i32
    %31 = arith.sitofp %30 : i32 to f32
    %32 = arith.addf %28, %31 : f32
    %33 = vector.broadcast %32 : f32 to vector<8x1xf32>
    %34 = arith.mulf %33, %15 : vector<8x1xf32>
    %35 = vector.broadcast %28 : f32 to vector<8x1xf32>
    %36 = arith.mulf %35, %20 : vector<8x1xf32>
    %37 = vector.broadcast %31 : f32 to vector<8x1xf32>
    %38 = arith.mulf %37, %25 : vector<8x1xf32>
    %39 = arith.addf %36, %38 : vector<8x1xf32>
    %40 = arith.subf %34, %39 : vector<8x1xf32>
    %c0_13 = arith.constant 0 : index
    %c0_14 = arith.constant 0 : index
    %c0_15 = arith.constant 0 : index
    %41 = vector.load %arg6[%c0_13, %c0_14, %c0_15] : memref<1x8x128xf32, #tpu.memory_space<vmem>>, vector<1x8x128xf32>
    %42 = vector.shape_cast %40 : vector<8x1xf32> to vector<1x8x1xf32>
    %43 = vector.shape_cast %42 : vector<1x8x1xf32> to vector<1x8x1xf32>
    %44 = vector.broadcast %43 : vector<1x8x1xf32> to vector<1x8x128xf32>
    %45 = arith.addf %41, %44 : vector<1x8x128xf32>
    %c0_16 = arith.constant 0 : index
    %c0_17 = arith.constant 0 : index
    %c0_18 = arith.constant 0 : index
    %46 = vector.load %arg6[%c0_16, %c0_17, %c0_18] : memref<1x8x128xf32, #tpu.memory_space<vmem>>, vector<1x8x128xf32>
    tpu.vector_store %arg6[%c0_16, %c0_17, %c0_18], %45 {strides = array<i32>} : memref<1x8x128xf32, #tpu.memory_space<vmem>>, vector<1x8x128xf32>,
    return
  }
  func.func @transform_0(%arg0: i32, %arg1: i32) -> i32 {
    %c0_i32 = arith.constant 0 : i32
    %c0_i32_0 = arith.constant 0 : i32
    return %c0_i32 : i32
  }
  func.func @transform_1(%arg0: i32, %arg1: i32) -> (i32, i32, i32) {
    %c0_i32 = arith.constant 0 : i32
    %c0_i32_0 = arith.constant 0 : i32
    %c0_i32_1 = arith.constant 0 : i32
    return %c0_i32, %arg0, %c0_i32_0 : i32, i32, i32
  }
  func.func @transform_2(%arg0: i32, %arg1: i32) -> (i32, i32) {
    %c0_i32 = arith.constant 0 : i32
    %c0_i32_0 = arith.constant 0 : i32
    %c0_i32_1 = arith.constant 0 : i32
    return %c0_i32, %c0_i32_0 : i32, i32
  }
  func.func @transform_3(%arg0: i32, %arg1: i32) -> (i32, i32) {
    %c1_i32 = arith.constant 1 : i32
    %0 = arith.muli %arg1, %c1_i32 : i32
    %1 = arith.addi %0, %arg0 : i32
    %c0_i32 = arith.constant 0 : i32
    %c0_i32_0 = arith.constant 0 : i32
    return %1, %c0_i32 : i32, i32
  }
  func.func @transform_4(%arg0: i32, %arg1: i32) -> (i32, i32, i32) {
    %c0_i32 = arith.constant 0 : i32
    %c0_i32_0 = arith.constant 0 : i32
    %c0_i32_1 = arith.constant 0 : i32
    return %arg0, %c0_i32, %c0_i32_0 : i32, i32, i32
  }
  func.func @transform_5(%arg0: i32, %arg1: i32) -> (i32, i32, i32) {
    %c0_i32 = arith.constant 0 : i32
    %c0_i32_0 = arith.constant 0 : i32
    %c0_i32_1 = arith.constant 0 : i32
    return %arg0, %c0_i32, %c0_i32_0 : i32, i32, i32
  }
}

</mosaic_0001>

<llo_original>
// kernel: _dino_forward.1
$region0: #{_dino_forward.1}
  #allocation0 [shape = 'u32[]', space=smem, size = 0x4, offset = 0x4, fixed_abs, tag = 'smem constant byte address 0x4 - core index']
  #allocation1 [shape = 'u32[144,128]{1,0:T(1,128)}', space=vmem, size = 0x12000, scoped, tag = 'internal scratch']
  #allocation2 [shape = 'f32[2,8,128]{2,1,0:T(8,128)}', space=vmem, size = 0x2000, scoped, tag = 'scratch operand']
  %s0 = inlined_call_operand.vmem [shape: f32[2], index: 0, kind: input, shape index: {}]
  %s1 = inlined_call_operand.hbm [shape: f32[2,8,128], index: 1, kind: input, shape index: {}]
  %s2 = inlined_call_operand.vmem [shape: f32[1,128], index: 2, kind: input, shape index: {}]
  %s3 = inlined_call_operand.hbm [shape: f32[32,128], index: 3, kind: input, shape index: {}]
  %s4 = inlined_call_operand.vmem [shape: f32[1,8,128], index: 4, kind: output, shape index: {0}]
  %s5 = inlined_call_operand.vmem [shape: f32[1,1,128], index: 5, kind: output, shape index: {1}]
  %6 = xla_tuple %s4, %s5
  %s7 = sld [smem:[#allocation0]]
  $region73: #{_dino_forward.1} parent=0
    _
  %s9 = ssub.s32 1, %s7
  %s10 = scalar_select 0, %s9, %s7
  $region1: #{_dino_forward.1} parent=0
    #allocation3 [shape = 'u8[512]{0}', space=smem, size = 0x200, scoped, tag = 'input window, operand 0, single buffered']
    #allocation4 [shape = 's32[2]{0}', space=sflag, size = 0x8, scoped, tag = 'scoped memory for _dino_forward.1']
    #allocation5 [shape = 's32[2]{0}', space=sflag, size = 0x8, scoped, tag = 'scoped memory for _dino_forward.1']
    #allocation6 [shape = 'u8[8192]{0}', space=vmem, size = 0x2000, scoped, tag = 'input window, operand 1, single buffered']
    #allocation7 [shape = 'u8[8192]{0}', space=vmem, size = 0x2000, scoped, tag = 'input window, operand 3']
    #allocation8 [shape = 's32[2]{0}', space=sflag, size = 0x8, scoped, tag = 'scoped memory for _dino_forward.1']
    %11 = vsyncpa [#allocation5], 0
    %12 = vsyncpa [#allocation4], 0
    %13 = vsyncpa [#allocation8], 0
    %s14 = scalar_lea.sflag [#allocation8], 1
    %15 = vsyncpa %s14, 0
    loop: start=0, step=1, limit=6
    $region2: #{_dino_forward.1} parent=1 // loop_pre_header
      _
    $region3: #{_dino_forward.1} parent=1 // loop_header
      %s17 = sphi 0, %s21
      %p18 = scmp.ge.s32.totalorder %s17, 6
      %s24 = sphi 0, %s36
      %s25 = sphi 0, %s32
      %s26 = sphi 0, %s24
      %s27 = sphi 0, %s25
      %s28 = sphi 0, %s26
      %s29 = sphi 0, %s27
      %s37 = sphi 0, %s37
      %s39 = sphi 0, %s37
      %s40 = sphi 0, %s39
      %s54 = sphi 0, %s40
      %s60 = sphi 0, %s62
      %s63 = sphi 0, %s60
      %s64 = sphi 0, %s63
      %s80 = sphi 0, %s64
      %s84 = sphi 0, %s84
      %s86 = sphi 0, %s84
      %s87 = sphi 0, %s86
      %s101 = sphi 0, %s87
      %s109 = sphi 0, %s111
      %s112 = sphi 0, %s109
      %s113 = sphi 0, %s112
      %s129 = sphi 0, %s113
      %s135 = sphi 0, %s137
      %s138 = sphi 0, %s135
      %s139 = sphi 0, %s138
      %s155 = sphi 0, %s139
      %s161 = sphi 0, %s163
      %s164 = sphi 0, %s161
      %s165 = sphi 0, %s164
      %s181 = sphi 0, %s165
    $region4: #{_dino_forward.1} parent=1 // loop_header_branch
      %20 = sbr.rel (%p18) target = $region8
    $region5: #{_dino_forward.1} parent=1 // loop_body
      %s22 = ssub.s32 %s17, 1
      %s23 = ssub.s32 %s17, 2
      %s30 = sadd.s32 1, %s25
      %p31 = scmp.ge.s32.totalorder %s30, 4
      %s32 = scalar_select %p31, 0, %s30
      %s33 = sadd.s32 1, %s24
      %s34 = scalar_select %p31, %s33, %s24
      %p35 = scmp.ge.s32.totalorder %s34, 1
      %s36 = scalar_select %p35, 0, %s34
      %s38 = sadd.s32 %s37, 1
      %p41 = scmp.eq.s32.totalorder %s17, 3
      %p42 = scmp.ne.s32.totalorder %s37, %s39
      %p43 = scmp.eq.s32.totalorder %s17, 0
      %p44 = por %p42, %p43
      %p45 = scmp.ne.s32.totalorder %s37, %s39
      %p46 = scmp.eq.s32.totalorder %s22, 3
      %p47 = por %p45, %p46
      %p48 = scmp.ne.s32.totalorder %s39, %s40
      %p49 = scmp.eq.s32.totalorder %s22, 0
      %p50 = por %p48, %p49
      %p51 = scmp.ne.s32.totalorder %s39, %s40
      %p52 = scmp.eq.s32.totalorder %s23, 3
      %p53 = por %p51, %p52
      %p55 = scmp.ne.s32.totalorder %s40, %s54
      %p56 = scmp.eq.s32.totalorder %s23, 0
      %p57 = por %p55, %p56
      %s58 = ssub.s32 %s24, %s36
      %p59 = scmp.eq.s32.totalorder %s58, 0
      %s61 = sadd.s32 %s60, 1
      %s62 = scalar_select %p59, %s60, %s61
      %p65 = pneg %p59
      %p66 = scmp.eq.s32.totalorder %s17, 3
      %p67 = por %p65, %p66
      %p68 = scmp.ne.s32.totalorder %s60, %s63
      %p69 = scmp.eq.s32.totalorder %s17, 0
      %p70 = por %p68, %p69
      %p71 = scmp.ne.s32.totalorder %s60, %s63
      %p72 = scmp.eq.s32.totalorder %s22, 3
      %p73 = por %p71, %p72
      %p74 = scmp.ne.s32.totalorder %s63, %s64
      %p75 = scmp.eq.s32.totalorder %s22, 0
      %p76 = por %p74, %p75
      %p77 = scmp.ne.s32.totalorder %s63, %s64
      %p78 = scmp.eq.s32.totalorder %s23, 3
      %p79 = por %p77, %p78
      %p81 = scmp.ne.s32.totalorder %s64, %s80
      %p82 = scmp.eq.s32.totalorder %s23, 0
      %p83 = por %p81, %p82
      %s85 = sadd.s32 %s84, 1
      %p88 = scmp.eq.s32.totalorder %s17, 3
      %p89 = scmp.ne.s32.totalorder %s84, %s86
      %p90 = scmp.eq.s32.totalorder %s17, 0
      %p91 = por %p89, %p90
      %p92 = scmp.ne.s32.totalorder %s84, %s86
      %p93 = scmp.eq.s32.totalorder %s22, 3
      %p94 = por %p92, %p93
      %p95 = scmp.ne.s32.totalorder %s86, %s87
      %p96 = scmp.eq.s32.totalorder %s22, 0
      %p97 = por %p95, %p96
      %p98 = scmp.ne.s32.totalorder %s86, %s87
      %p99 = scmp.eq.s32.totalorder %s23, 3
      %p100 = por %p98, %p99
      %p102 = scmp.ne.s32.totalorder %s87, %s101
      %p103 = scmp.eq.s32.totalorder %s23, 0
      %p104 = por %p102, %p103
      %s105 = sadd.s32 %s25, %s24
      %s106 = sadd.s32 %s32, %s36
      %s107 = ssub.s32 %s105, %s106
      %p108 = scmp.eq.s32.totalorder %s107, 0
      %s110 = sadd.s32 %s109, 1
      %s111 = scalar_select %p108, %s109, %s110
      %p114 = pneg %p108
      %p115 = scmp.eq.s32.totalorder %s17, 3
      %p116 = por %p114, %p115
      %p117 = scmp.ne.s32.totalorder %s109, %s112
      %p118 = scmp.eq.s32.totalorder %s17, 0
      %p119 = por %p117, %p118
      %p120 = scmp.ne.s32.totalorder %s109, %s112
      %p121 = scmp.eq.s32.totalorder %s22, 3
      %p122 = por %p120, %p121
      %p123 = scmp.ne.s32.totalorder %s112, %s113
      %p124 = scmp.eq.s32.totalorder %s22, 0
      %p125 = por %p123, %p124
      %p126 = scmp.ne.s32.totalorder %s112, %s113
      %p127 = scmp.eq.s32.totalorder %s23, 3
      %p128 = por %p126, %p127
      %p130 = scmp.ne.s32.totalorder %s113, %s129
      %p131 = scmp.eq.s32.totalorder %s23, 0
      %p132 = por %p130, %p131
      %s133 = ssub.s32 %s24, %s36
      %p134 = scmp.eq.s32.totalorder %s133, 0
      %s136 = sadd.s32 %s135, 1
      %s137 = scalar_select %p134, %s135, %s136
      %p140 = pneg %p134
      %p141 = scmp.eq.s32.totalorder %s17, 3
      %p142 = por %p140, %p141
      %p143 = scmp.ne.s32.totalorder %s135, %s138
      %p144 = scmp.eq.s32.totalorder %s17, 0
      %p145 = por %p143, %p144
      %p146 = scmp.ne.s32.totalorder %s135, %s138
      %p147 = scmp.eq.s32.totalorder %s22, 3
      %p148 = por %p146, %p147
      %p149 = scmp.ne.s32.totalorder %s138, %s139
      %p150 = scmp.eq.s32.totalorder %s22, 0
      %p151 = por %p149, %p150
      %p152 = scmp.ne.s32.totalorder %s138, %s139
      %p153 = scmp.eq.s32.totalorder %s23, 3
      %p154 = por %p152, %p153
      %p156 = scmp.ne.s32.totalorder %s139, %s155
      %p157 = scmp.eq.s32.totalorder %s23, 0
      %p158 = por %p156, %p157
      %s159 = ssub.s32 %s24, %s36
      %p160 = scmp.eq.s32.totalorder %s159, 0
      %s162 = sadd.s32 %s161, 1
      %s163 = scalar_select %p160, %s161, %s162
      %p166 = pneg %p160
      %p167 = scmp.eq.s32.totalorder %s17, 3
      %p168 = por %p166, %p167
      %p169 = scmp.ne.s32.totalorder %s161, %s164
      %p170 = scmp.eq.s32.totalorder %s17, 0
      %p171 = por %p169, %p170
      %p172 = scmp.ne.s32.totalorder %s161, %s164
      %p173 = scmp.eq.s32.totalorder %s22, 3
      %p174 = por %p172, %p173
      %p175 = scmp.ne.s32.totalorder %s164, %s165
      %p176 = scmp.eq.s32.totalorder %s22, 0
      %p177 = por %p175, %p176
      %p178 = scmp.ne.s32.totalorder %s164, %s165
      %p179 = scmp.eq.s32.totalorder %s23, 3
      %p180 = por %p178, %p179
      %p182 = scmp.ne.s32.totalorder %s165, %s181
      %p183 = scmp.eq.s32.totalorder %s23, 0
      %p184 = por %p182, %p183
      %p185 = scmp.le.s32.totalorder 1, %s17
      %p186 = scmp.lt.s32.totalorder %s17, 5
      %p187 = pnand %p185, %p186
      %p188 = pneg %p187
      // Predicated region
      $region9: #{_dino_forward.1} parent=5 // pred_check
        _
      $region10: #{_dino_forward.1} parent=5 // pred_check_branch
        %190 = sbr.rel (%p187) target = $region12
      $region11: #{_dino_forward.1} parent=5 // pred_region
        %s191 = ssub.s32 %s17, 1
        // Predicated region
        $region13: #{_dino_forward.1} parent=11 // pred_check
          %p192 = pneg %p50
        $region14: #{_dino_forward.1} parent=11 // pred_check_branch
          %194 = sbr.rel (%p192) target = $region16
        $region15: #{_dino_forward.1} parent=11 // pred_region
          %s196 = ssub.s32 16, 16
          %197 = vsyncadd [#allocation5], %s196
          %s199 = sshll.u32 %s0, 4
          %s200 = int_to_ptr.vmem [resolvable:$true] %s199
          %202 = dma.vmem_to_smem %s200, 16, [#allocation3], [#allocation5]
        $region16: #{_dino_forward.1} parent=11 // pred_fallthru
          _
        // Predicated region
        $region17: #{_dino_forward.1} parent=11 // pred_check
          %p203 = pneg %p76
        $region18: #{_dino_forward.1} parent=11 // pred_check_branch
          %205 = sbr.rel (%p203) target = $region20
        $region19: #{_dino_forward.1} parent=11 // pred_region
          %s207 = ssub.s32 256, 256
          %208 = vsyncadd [#allocation4], %s207
          %s209 = smul.addr %s26, 128
          %s210 = scalar_lea.hbm %s1, %s209
          %s211 = sshll.u32 [#allocation6], 4
          %s212 = int_to_ptr.vmem [resolvable:$true] %s211
          %217 = dma.hbm_to_vmem [thread:$0]  %s210, 256, %s212, [#allocation4], 128, 128, 8
        $region20: #{_dino_forward.1} parent=11 // pred_fallthru
          _
        // Predicated region
        $region21: #{_dino_forward.1} parent=11 // pred_check
          %p218 = pneg %p97
        $region22: #{_dino_forward.1} parent=11 // pred_check_branch
          %220 = sbr.rel (%p218) target = $region24
        $region23: #{_dino_forward.1} parent=11 // pred_region
          _
        $region24: #{_dino_forward.1} parent=11 // pred_fallthru
          _
      $region12: #{_dino_forward.1} parent=5 // pred_fallthru
        _
      %p221 = scmp.lt.s32.totalorder %s17, 4
      // Predicated region
      $region25: #{_dino_forward.1} parent=5 // pred_check
        %p222 = pneg %p221
      $region26: #{_dino_forward.1} parent=5 // pred_check_branch
        %224 = sbr.rel (%p222) target = $region28
      $region27: #{_dino_forward.1} parent=5 // pred_region
        // Predicated region
        $region29: #{_dino_forward.1} parent=27 // pred_check
          %p225 = pneg %p119
        $region30: #{_dino_forward.1} parent=27 // pred_check_branch
          %227 = sbr.rel (%p225) target = $region32
        $region31: #{_dino_forward.1} parent=27 // pred_region
          %s228 = sand.u32 %s109, 1
          %s229 = scalar_lea.sflag [#allocation8], %s228
          %s230 = sand.u32 %s109, 1
          %s231 = smul.addr %s230, 8
          %s232 = scalar_lea.vmem [#allocation7], %s231
          %s233 = sadd.s32 %s25, %s24
          %s235 = ssub.s32 128, 128
          %236 = vsyncadd %s229, %s235
          %s237 = smul.addr %s233, 128
          %s238 = scalar_lea.hbm %s3, %s237
          %s240 = sshll.u32 %s232, 4
          %s241 = int_to_ptr.vmem [resolvable:$true] %s240
          %243 = dma.hbm_to_vmem [thread:$0]  %s238, 128, %s241, %s229
        $region32: #{_dino_forward.1} parent=27 // pred_fallthru
          _
      $region28: #{_dino_forward.1} parent=5 // pred_fallthru
        _
      %p244 = scmp.le.s32.totalorder 1, %s17
      %p245 = scmp.lt.s32.totalorder %s17, 5
      %p246 = pnand %p244, %p245
      %p247 = pneg %p246
      // Predicated region
      $region33: #{_dino_forward.1} parent=5 // pred_check
        _
      $region34: #{_dino_forward.1} parent=5 // pred_check_branch
        %249 = sbr.rel (%p246) target = $region36
      $region35: #{_dino_forward.1} parent=5 // pred_region
        %s250 = ssub.s32 %s17, 1
        // Predicated region
        $region37: #{_dino_forward.1} parent=35 // pred_check
          %p251 = pneg %p50
        $region38: #{_dino_forward.1} parent=35 // pred_check_branch
          %253 = sbr.rel (%p251) target = $region40
        $region39: #{_dino_forward.1} parent=35 // pred_region
          %254 = dma.done [#allocation5], 16
        $region40: #{_dino_forward.1} parent=35 // pred_fallthru
          _
        // Predicated region
        $region41: #{_dino_forward.1} parent=35 // pred_check
          %p255 = pneg %p76
        $region42: #{_dino_forward.1} parent=35 // pred_check_branch
          %257 = sbr.rel (%p255) target = $region44
        $region43: #{_dino_forward.1} parent=35 // pred_region
          %258 = dma.done [#allocation4], 256
        $region44: #{_dino_forward.1} parent=35 // pred_fallthru
          _
        %s259 = sand.u32 %s112, 1
        %s260 = scalar_lea.sflag [#allocation8], %s259
        %s261 = sand.u32 %s112, 1
        %s262 = smul.addr %s261, 8
        %s263 = scalar_lea.vmem [#allocation7], %s262
        // Predicated region
        $region45: #{_dino_forward.1} parent=35 // pred_check
          %p264 = pneg %p125
        $region46: #{_dino_forward.1} parent=35 // pred_check_branch
          %266 = sbr.rel (%p264) target = $region48
        $region47: #{_dino_forward.1} parent=35 // pred_region
          %267 = dma.done %s260, 128
        $region48: #{_dino_forward.1} parent=35 // pred_fallthru
          _
        %268 = sfence
        %p269 = pneg %p50
        %p270 = pneg %p47
        %p271 = pneg %p76
        %p272 = pneg %p73
        %p273 = pneg %p97
        %p274 = pneg %p94
        %s275 = sand.u32 %s112, 1
        %s276 = scalar_lea.sflag [#allocation8], %s275
        %s277 = sand.u32 %s112, 1
        %s278 = smul.addr %s277, 8
        %s279 = scalar_lea.vmem [#allocation7], %s278
        %p280 = pneg %p125
        %p281 = pneg %p122
        %p282 = pneg %p151
        %p283 = pneg %p148
        %p284 = scmp.lt.s32.totalorder %s26, 0
        %s285 = scalar_select %p284, %s26, 0
        %s286 = smul.addr %s285, 8
        %s287 = scalar_lea.vmem %s4, %s286
        %p288 = pneg %p177
        %p289 = pneg %p174
        %p290 = scmp.lt.s32.totalorder %s26, 0
        %s291 = scalar_select %p290, %s26, 0
        %s292 = scalar_lea.vmem %s5, %s291
        %s293 = sadd.s32 %s27, %s26
        %p294 = scmp.lt.s32.totalorder %s26, 0
        %s295 = scalar_select %p294, %s26, 0
        %s296 = smul.addr %s295, 8
        %s297 = scalar_lea.vmem %s4, %s296
        %p298 = scmp.lt.s32.totalorder %s26, 0
        %s299 = scalar_select %p298, %s26, 0
        %s300 = scalar_lea.vmem %s5, %s299
        %s301 = sld [smem:[#allocation3]]
        %s302 = sld [smem:[#allocation3 + $0x1]]
        %p303 = scmp.eq.s32.totalorder %s27, 0
        // Predicated region
        $region49: #{_dino_forward.1} parent=35 // pred_check
          %p304 = pneg %p303
        $region50: #{_dino_forward.1} parent=35 // pred_check_branch
          %306 = sbr.rel (%p304) target = $region52
        $region51: #{_dino_forward.1} parent=35 // pred_region
          %v307 = vld [vmem:[#allocation6] sm:$0xff]
          %v308 = vld [vmem:[#allocation6 + $0x8] sm:$0xff]
          %v309 = vrot.slane %v307, 4
          %v310 = vadd.f32 %v307, %v309
          %v311 = vrot.slane %v310, 2
          %v312 = vadd.f32 %v310, %v311
          %v313 = vrot.slane %v312, 1
          %v314 = vadd.f32 %v312, %v313
          %v315 = vrot.slane %v308, 4
          %v316 = vadd.f32 %v308, %v315
          %v317 = vrot.slane %v316, 2
          %v318 = vadd.f32 %v316, %v317
          %v319 = vrot.slane %v318, 1
          %v320 = vadd.f32 %v318, %v319
          %v321 = vadd.f32 %v314, %v320
          %322 = vst [vmem:[%s300] sm:$0x1] %v321
          %v323 = vld [vmem:[%s2] sm:$0x1]
          %v325 = vlaneseq
          %v326 = vshrl.u32 %v325, 7
          %v327 = vsub.s32 0, %v326
          %v328 = vrot.slane %v323, %v327
          %v330 = vsub.f32 %v307, %v328
          %v331 = vsub.f32 %v308, %v328
          %v332 = vstv %s301
          %v333 = vmul.f32 %v330, %v332
          %v334 = vmul.f32 %v331, %v332
          %335 = vmax.xlane.f32.xlu0 %v333
          %v336 = vpop.xlane.xlu0 %335
          %337 = vmax.xlane.f32.xlu0 %v334
          %v338 = vpop.xlane.xlu0 %337
          %v339 = vsub.f32 %v333, %v336
          %v340 = vsub.f32 %v334, %v338
          %v341 = vmul.f32 %v339, 1.442695
          %v342 = vpow.pop %v341
          %v343 = vmul.f32 %v340, 1.442695
          %v344 = vpow.pop %v343
          %345 = vadd.xlane.f32.xlu0 %v342
          %v346 = vpop.xlane.xlu0 %345
          %347 = vadd.xlane.f32.xlu0 %v344
          %v348 = vpop.xlane.xlu0 %347
          %v349 = vrcp.pop %v346
          %v350 = vrcp.pop %v348
          %v351 = vmul.f32 %v342, %v349
          %v352 = vmul.f32 %v344, %v350
          %353 = vst [vmem:[#allocation2] sm:$0xff] %v351
          %354 = vst [vmem:[#allocation2 + $0x8] sm:$0xff] %v352
          %355 = vst [vmem:[%s297] sm:$0xff] 0.0
        $region52: #{_dino_forward.1} parent=35 // pred_fallthru
          _
        %v356 = vld [vmem:[%s263] sm:$0xff]
        %v357 = vstv %s302
        %v358 = vmul.f32 %v356, %v357
        %359 = vmax.xlane.f32.xlu0 %v358
        %v360 = vpop.xlane.xlu0 %359
        %v361 = vsub.f32 %v358, %v360
        %v362 = vmul.f32 %v361, 1.442695
        %v363 = vpow.pop %v362
        %364 = vadd.xlane.f32.xlu0 %v363
        %v365 = vpop.xlane.xlu0 %364
        %v366 = vlog2.pop %v365
        %v367 = vmul.f32 %v366, 0.6931472
        %v368 = vld [vmem:[#allocation2] sm:$0xff]
        %v369 = vmul.f32 %v368, %v361
        %370 = vadd.xlane.f32.xlu0 %v369
        %v371 = vpop.xlane.xlu0 %370
        %s372 = scalar_lea.vmem [#allocation2], 8
        %v373 = vld [vmem:[%s372] sm:$0xff]
        %v374 = vmul.f32 %v373, %v361
        %375 = vadd.xlane.f32.xlu0 %v374
        %v376 = vpop.xlane.xlu0 %375
        %p377 = scmp.ne.s32.totalorder %s27, 0
        %s378 = scalar_select %p377, 1, 0
        %s379 = scvt.s32.f32 %s378
        %p380 = scmp.ne.s32.totalorder %s27, 1
        %s381 = scalar_select %p380, 1, 0
        %s382 = scvt.s32.f32 %s381
        %s383 = sadd.f32 %s379, %s382
        %v384 = vstv %s383
        %v385 = vmul.f32 %v384, %v367
        %v386 = vstv %s379
        %v387 = vmul.f32 %v386, %v371
        %v388 = vstv %s382
        %v389 = vmul.f32 %v388, %v376
        %v390 = vadd.f32 %v387, %v389
        %v391 = vsub.f32 %v385, %v390
        %v392 = vld [vmem:[%s297] sm:$0xff]
        %v393 = vadd.f32 %v392, %v391
        %394 = vst [vmem:[%s297] sm:$0xff] %v393
        %p395 = scmp.lt.s32.totalorder %s26, 0
        %s396 = scalar_select %p395, %s26, 0
        %s397 = smul.addr %s396, 8
        %s398 = scalar_lea.vmem %s4, %s397
        %p399 = scmp.lt.s32.totalorder %s26, 0
        %s400 = scalar_select %p399, %s26, 0
        %s401 = scalar_lea.vmem %s5, %s400
        // Predicated region
        $region53: #{_dino_forward.1} parent=35 // pred_check
          %p402 = pneg %p148
        $region54: #{_dino_forward.1} parent=35 // pred_check_branch
          %404 = sbr.rel (%p402) target = $region56
        $region55: #{_dino_forward.1} parent=35 // pred_region
          _
        $region56: #{_dino_forward.1} parent=35 // pred_fallthru
          _
        // Predicated region
        $region57: #{_dino_forward.1} parent=35 // pred_check
          %p405 = pneg %p174
        $region58: #{_dino_forward.1} parent=35 // pred_check_branch
          %407 = sbr.rel (%p405) target = $region60
        $region59: #{_dino_forward.1} parent=35 // pred_region
          _
        $region60: #{_dino_forward.1} parent=35 // pred_fallthru
          _
        // Predicated region
        $region61: #{_dino_forward.1} parent=35 // pred_check
          %p408 = pneg %p148
        $region62: #{_dino_forward.1} parent=35 // pred_check_branch
          %410 = sbr.rel (%p408) target = $region64
        $region63: #{_dino_forward.1} parent=35 // pred_region
          %p411 = scmp.lt.s32.totalorder %s26, 0
          %s412 = scalar_select %p411, %s26, 0
          %s413 = smul.addr %s412, 8
          %s414 = scalar_lea.vmem %s4, %s413
        $region64: #{_dino_forward.1} parent=35 // pred_fallthru
          _
        // Predicated region
        $region65: #{_dino_forward.1} parent=35 // pred_check
          %p415 = pneg %p174
        $region66: #{_dino_forward.1} parent=35 // pred_check_branch
          %417 = sbr.rel (%p415) target = $region68
        $region67: #{_dino_forward.1} parent=35 // pred_region
          %p418 = scmp.lt.s32.totalorder %s26, 0
          %s419 = scalar_select %p418, %s26, 0
          %s420 = scalar_lea.vmem %s5, %s419
        $region68: #{_dino_forward.1} parent=35 // pred_fallthru
          _
      $region36: #{_dino_forward.1} parent=5 // pred_fallthru
        _
      %p421 = scmp.le.s32.totalorder 2, %s17
      // Predicated region
      $region69: #{_dino_forward.1} parent=5 // pred_check
        %p422 = pneg %p421
      $region70: #{_dino_forward.1} parent=5 // pred_check_branch
        %424 = sbr.rel (%p422) target = $region72
      $region71: #{_dino_forward.1} parent=5 // pred_region
        %s425 = ssub.s32 %s17, 2
      $region72: #{_dino_forward.1} parent=5 // pred_fallthru
        _
    $region6: #{_dino_forward.1} parent=1 // loop_footer
      %s21 = sadd.s32 1, %s17
    $region7: #{_dino_forward.1} parent=1 // loop_footer_branch
      %16 = sbr.rel target = $region3
    $region8: #{_dino_forward.1} parent=1 // loop_exit
      _
    %426 = vsyncpa [#allocation4], 1
    %s427 = scalar_lea.sflag [#allocation4], 1
    %428 = vsyncpa %s427, 1
    %429 = vsyncpa [#allocation8], 1
    %s430 = scalar_lea.sflag [#allocation8], 1
    %431 = vsyncpa %s430, 1
    %432 = vsyncpa [#allocation5], 1
    %s433 = scalar_lea.sflag [#allocation5], 1
    %434 = vsyncpa %s433, 1

</llo_original>
